<compile_context>
chip_gen: v7x
topology: tpu7x:2x2x1
jax: 0.10.0
libtpu: 0.0.40
codegen_flags: <defaults>
</compile_context>

<pallas_src>
import functools

import jax
import jax.numpy as jnp
from jax import lax
from jax.experimental import pallas as pl
from jax.experimental.pallas import tpu as pltpu

_LANES = 128
_SUBLANES = 8
_TARGET_TILE_BYTES = 8 * 1024 * 1024   # ~8 MiB per tile (v6e/v7x sweet spot)
_VMEM_LIMIT_BYTES = 48 * 1024 * 1024   # > 4 * tile bytes, < v7x 64 MiB physical


def _srelu_kernel(x_ref, o_ref, *, k):
    x = x_ref[...]
    r = jnp.maximum(x, jnp.zeros_like(x))              # relu (VPU)
    kf = float(k)
    if kf.is_integer():
        ki = int(kf)
        # Integer power: pure VPU multiplies (k=2 -> r*r), no EUP.
        o_ref[...] = r if ki == 1 else lax.integer_pow(r, ki)
    elif (2.0 * kf).is_integer() and kf > 0:
        # Half-integer power: r**k = r**(k-1/2) * sqrt(r) -> single EUP op.
        r32 = r.astype(jnp.float32)
        out = lax.integer_pow(r32, int(kf - 0.5)) * jnp.sqrt(r32)
        o_ref[...] = out.astype(o_ref.dtype)
    elif kf > 0:
        # General positive exponent: explicit exp/log (EUP), f32 internally,
        # with r==0 handled by select (avoids generic pow lowering filler).
        r32 = r.astype(jnp.float32)
        out = jnp.where(r32 > 0, jnp.exp(kf * jnp.log(r32)), 0.0)
        o_ref[...] = out.astype(o_ref.dtype)
    else:
        # Pathological non-integer k <= 0: keep torch's 0**k semantics.
        o_ref[...] = jnp.power(r, jnp.asarray(kf, x.dtype))


def _cost_estimate(n_elems, itemsize, k):
    kf = float(k)
    if kf.is_integer():
        flops, trans = 2 * n_elems, 0
    elif (2.0 * kf).is_integer() and kf > 0:
        flops, trans = 3 * n_elems, n_elems
    else:
        flops, trans = 3 * n_elems, 2 * n_elems
    return pl.CostEstimate(flops=int(flops), transcendentals=int(trans),
                           bytes_accessed=int(2 * n_elems * itemsize))


def _srelu_2d(x2d, k, block_rows):
    rows, lanes = x2d.shape
    kernel = functools.partial(_srelu_kernel, k=k)
    cost = _cost_estimate(x2d.size, x2d.dtype.itemsize, k)
    out_shape = jax.ShapeDtypeStruct((rows, lanes), x2d.dtype)

    if rows <= block_rows:
        # Small input: one whole-array VMEM block, no grid / pipelining.
        return pl.pallas_call(
            kernel,
            out_shape=out_shape,
            compiler_params=pltpu.CompilerParams(
                vmem_limit_bytes=_VMEM_LIMIT_BYTES),
            cost_estimate=cost,
        )(x2d)

    # TODO(synk): on v7x, sweep pltpu.CORE_PARALLEL (or an explicit leading
    # grid axis of size 2) so the row axis provably shards across both
    # TensorCores; PARALLEL is kept here because it is valid on every chip.
    grid = (pl.cdiv(rows, block_rows),)
    return pl.pallas_call(
        kernel,
        out_shape=out_shape,
        grid=grid,
        in_specs=[pl.BlockSpec((block_rows, lanes), lambda i: (i, 0))],
        out_specs=pl.BlockSpec((block_rows, lanes), lambda i: (i, 0)),
        compiler_params=pltpu.CompilerParams(
            dimension_semantics=(pltpu.PARALLEL,),
            vmem_limit_bytes=_VMEM_LIMIT_BYTES),
        cost_estimate=cost,
    )(x2d)


def _srelu_tail(x_tail, k):
    # < 128 elements: a single (1, n) whole-array block (block == full array
    # dims, so the (8,128) block-shape constraint does not apply).
    n = x_tail.shape[0]
    kernel = functools.partial(_srelu_kernel, k=k)
    out = pl.pallas_call(
        kernel,
        out_shape=jax.ShapeDtypeStruct((1, n), x_tail.dtype),
        cost_estimate=_cost_estimate(n, x_tail.dtype.itemsize, k),
    )(x_tail.reshape(1, n))
    return out.reshape(n)


def srelu(x, k=2.0, *, block_rows=None):
    """Elementwise SReLU forward: relu(x) ** k.  Accepts any shape (e.g. NCHW)."""
    try:
        kf = float(k)
    except Exception as e:
        raise TypeError(
            "SReLU exponent k must be a static Python scalar; got a traced or "
            f"non-scalar value: {k!r}") from e

    orig_shape = x.shape
    total = x.size
    if total == 0:
        return x

    itemsize = jnp.dtype(x.dtype).itemsize
    if block_rows is None:
        # Constant ~8 MiB tile in BYTES regardless of dtype (bf16/int8 get
        # proportionally more rows).
        block_rows = _TARGET_TILE_BYTES // (_LANES * itemsize)
    block_rows = max(_SUBLANES, (int(block_rows) // _SUBLANES) * _SUBLANES)

    x_flat = jnp.ravel(x)                 # no-copy reshape for contiguous input
    rem = total % _LANES
    main = total - rem

    outs = []
    if main > 0:
        x_main = x_flat if rem == 0 else x_flat[:main]
        x2d = x_main.reshape(main // _LANES, _LANES)
        outs.append(_srelu_2d(x2d, kf, block_rows).reshape(-1))
    if rem > 0:
        # Rare ragged case (x.size % 128 != 0): <128-element tail via a tiny
        # extra call; no full-tensor pad pass.
        # TODO(synk): a fully copy-free ragged path would need manual DMA of
        # the flat HBM ref with the true length passed via scalar prefetch.
        outs.append(_srelu_tail(x_flat[main:], kf))

    out_flat = outs[0] if len(outs) == 1 else jnp.concatenate(outs)
    return out_flat.reshape(orig_shape)


def srelu_ref(x, k=2.0):
    return jnp.power(jnp.maximum(x, jnp.zeros_like(x)), jnp.asarray(k, x.dtype))


if __name__ == "__main__":
    key = jax.random.PRNGKey(0)

    # NCHW activation shape consistent with the module's typical use.
    x = jax.random.normal(key, (2, 4, 16, 16), dtype=jnp.float32)

    # 1) Small-input (single whole-array block) path, k = 2.0 integer fast path.
    out = srelu(x, k=2.0)
    jax.block_until_ready(out)
    ref = srelu_ref(x, k=2.0)
    assert out.shape == x.shape and out.dtype == x.dtype
    assert jnp.allclose(out, ref, atol=1e-5, rtol=1e-5)

    # 2) Gridded, pipelined path (tiny blocks forced so the grid is exercised
    #    on small data), still integer k.
    out_grid = srelu(x, k=2.0, block_rows=8)
    jax.block_until_ready(out_grid)
    assert jnp.allclose(out_grid, ref, atol=1e-5, rtol=1e-5)

    # 2b) Gridded path with a ragged (masked) last block: 2560 elems -> 20 rows,
    #     block_rows=8 -> grid of 3 with a partial final block.  Integer k=3.
    x3 = jax.random.normal(jax.random.PRNGKey(0), (5, 512), dtype=jnp.float32)
    out3 = srelu(x3, k=3.0, block_rows=8)
    jax.block_until_ready(out3)
    assert jnp.allclose(out3, srelu_ref(x3, k=3.0), atol=1e-5, rtol=1e-5)

    # 3) x.size % 128 != 0 (prefix + tail path) with a half-integer exponent
    #    (single-EUP sqrt decomposition instead of exp/log pow).
    x2 = jax.random.normal(jax.random.PRNGKey(0), (2, 3, 7, 5), dtype=jnp.float32)
    out2 = srelu(x2, k=2.5)
    jax.block_until_ready(out2)
    assert out2.shape == x2.shape
    assert jnp.allclose(out2, srelu_ref(x2, k=2.5), atol=1e-5, rtol=1e-5)

    # 4) bf16 input: exercises dtype-scaled tile sizing and dtype round-trip.
    xb = jax.random.normal(jax.random.PRNGKey(0), (2, 4, 16, 16), dtype=jnp.bfloat16)
    outb = srelu(xb, k=2.0)
    jax.block_until_ready(outb)
    assert outb.dtype == jnp.bfloat16
    assert jnp.allclose(outb.astype(jnp.float32),
                        srelu_ref(xb, k=2.0).astype(jnp.float32),
                        atol=2e-2, rtol=2e-2)

    print("KERNEL_OK")
</pallas_src>

<mosaic_0001>
module attributes {stable_mosaic.version = 11 : i64} {
  func.func @_srelu_kernel(%arg0: memref<16x128xf32, #tpu.memory_space<vmem>>, %arg1: memref<16x128xf32, #tpu.memory_space<vmem>>) attributes {dimension_semantics = [], scalar_prefetch = 0 : i64, scratch_operands = 0 : i64, tpu.core_type = #tpu.core_type<tc>} {
    %c0 = arith.constant 0 : index
    %c0_0 = arith.constant 0 : index
    %0 = vector.load %arg0[%c0, %c0_0] : memref<16x128xf32, #tpu.memory_space<vmem>>, vector<16x128xf32>
    %cst = arith.constant 0.000000e+00 : f32
    %1 = vector.broadcast %cst : f32 to vector<16x128xf32>
    %2 = arith.maximumf %0, %1 : vector<16x128xf32>
    %3 = arith.mulf %2, %2 : vector<16x128xf32>
    %c0_1 = arith.constant 0 : index
    %c0_2 = arith.constant 0 : index
    %4 = vector.load %arg1[%c0_1, %c0_2] : memref<16x128xf32, #tpu.memory_space<vmem>>, vector<16x128xf32>
    tpu.vector_store %arg1[%c0_1, %c0_2], %3 {strides = array<i32>} : memref<16x128xf32, #tpu.memory_space<vmem>>, vector<16x128xf32>,
    return
  }
}

</mosaic_0001>

<llo_original>
// kernel: tpu_custom_call.1
$region0: #{tpu_custom_call.1}
  #allocation0 [shape = 'u32[]', space=smem, size = 0x4, offset = 0x4, fixed_abs, tag = 'smem constant byte address 0x4 - core index']
  #allocation1 [shape = 'u32[144,128]{1,0:T(1,128)}', space=vmem, size = 0x12000, scoped, tag = 'internal scratch']
  %s0 = inlined_call_operand.hbm [shape: f32[16,128], index: 0, kind: input, shape index: {}]
  %s1 = inlined_call_operand.hbm [shape: f32[16,128], index: 1, kind: output, shape index: {}]
  %s2 = sld [smem:[#allocation0]]
  $region18: #{tpu_custom_call.1} parent=0
    _
  %s4 = ssub.s32 1, %s2
  %s5 = scalar_select 0, %s4, %s2
  $region1: #{tpu_custom_call.1} parent=0
    #allocation2 [shape = 'u8[8192]{0}', space=vmem, size = 0x2000, scoped, tag = 'input window, operand 0, single buffered']
    #allocation3 [shape = 's32[1]{0}', space=sflag, size = 0x4, scoped, tag = 'scoped memory for tpu_custom_call.1']
    #allocation4 [shape = 's32[1]{0}', space=sflag, size = 0x4, scoped, tag = 'scoped memory for tpu_custom_call.1']
    #allocation5 [shape = 'u8[8192]{0}', space=vmem, size = 0x2000, scoped, tag = 'output window, operand 0, single buffered']
    %6 = vsyncpa [#allocation3], 0
    %7 = vsyncpa [#allocation4], 0
    // Predicated region
    $region2: #{tpu_custom_call.1} parent=1 // pred_check
      _
    $region3: #{tpu_custom_call.1} parent=1 // pred_check_branch
      %9 = sbr.rel (0) target = $region5
    $region4: #{tpu_custom_call.1} parent=1 // pred_region
      %s11 = ssub.s32 256, 256
      %12 = vsyncadd [#allocation3], %s11
      %s13 = sshll.u32 [#allocation2], 4
      %s14 = int_to_ptr.vmem [resolvable:$true] %s13
      %19 = dma.hbm_to_vmem [thread:$0]  %s0, 256, %s14, [#allocation3], 128, 128, 8
    $region5: #{tpu_custom_call.1} parent=1 // pred_fallthru
      _
    // Predicated region
    $region6: #{tpu_custom_call.1} parent=1 // pred_check
      _
    $region7: #{tpu_custom_call.1} parent=1 // pred_check_branch
      %21 = sbr.rel (0) target = $region9
    $region8: #{tpu_custom_call.1} parent=1 // pred_region
      %22 = dma.done [#allocation3], 256
    $region9: #{tpu_custom_call.1} parent=1 // pred_fallthru
      _
    %v23 = vld [vmem:[#allocation2] sm:$0xff]
    %v24 = vld [vmem:[#allocation2 + $0x8] sm:$0xff]
    %v25 = vmax.f32 %v23, 0.0
    %v26 = vmax.f32 %v24, 0.0
    %v27 = vmul.f32 %v25, %v25
    %v28 = vmul.f32 %v26, %v26
    %29 = vst [vmem:[#allocation5] sm:$0xff] %v27
    %30 = vst [vmem:[#allocation5 + $0x8] sm:$0xff] %v28
    // Predicated region
    $region10: #{tpu_custom_call.1} parent=1 // pred_check
      _
    $region11: #{tpu_custom_call.1} parent=1 // pred_check_branch
      %32 = sbr.rel (0) target = $region13
    $region12: #{tpu_custom_call.1} parent=1 // pred_region
      %s34 = ssub.s32 256, 256
      %35 = vsyncadd [#allocation4], %s34
      %s36 = sshll.u32 [#allocation5], 4
      %s37 = int_to_ptr.vmem [resolvable:$true] %s36
      %42 = dma.vmem_to_hbm [thread:$0]  %s37, 256, %s1, [#allocation4], 128, 128, 8
    $region13: #{tpu_custom_call.1} parent=1 // pred_fallthru
      _
    // Predicated region
    $region14: #{tpu_custom_call.1} parent=1 // pred_check
      _
    $region15: #{tpu_custom_call.1} parent=1 // pred_check_branch
      %44 = sbr.rel (0) target = $region17
    $region16: #{tpu_custom_call.1} parent=1 // pred_region
      %45 = dma.done [#allocation4], 256
    $region17: #{tpu_custom_call.1} parent=1 // pred_fallthru
      _
    %46 = vsyncpa [#allocation3], 1
    %47 = vsyncpa [#allocation4], 1

</llo_original>
